<compile_context>
chip_gen: v6e
topology: v6e:2x2x1
jax: 0.10.0
libtpu: 0.0.40
codegen_flags: <defaults>
</compile_context>

<pallas_src>
import functools

import jax
import jax.numpy as jnp
from jax.experimental import pallas as pl
from jax.experimental.pallas import tpu as pltpu


def _dit_final_layer_kernel(x_ref, gamma_ref, shift_ref, w_ref, b_ref, o_ref,
                            *, eps):
    # x_ref:     [1, TQ, D]   (stream dtype, e.g. bf16)
    # gamma_ref: [1, 1, D]    f32   (= ln_w * (1 + scale), folded in wrapper)
    # shift_ref: [1, 1, D]    f32
    # w_ref:     [D, OUT]     compute dtype (bf16 for peak MXU)
    # b_ref:     [1, OUT]     f32
    # o_ref:     [1, TQ, OUT]
    x = x_ref[0].astype(jnp.float32)                          # [TQ, D]

    # One-pass LayerNorm statistics in f32: var = E[x^2] - mu^2.
    mu = jnp.mean(x, axis=-1, keepdims=True)                  # [TQ, 1]
    ex2 = jnp.mean(x * x, axis=-1, keepdims=True)             # [TQ, 1]
    var = jnp.maximum(ex2 - mu * mu, 0.0)
    inv = jax.lax.rsqrt(var + eps)                            # [TQ, 1]

    # Fused normalize + modulate: (x - mu) * inv * gamma + shift.
    h = (x - mu) * inv * gamma_ref[0] + shift_ref[0]          # [TQ, D] f32

    # Final projection on the MXU (f32 accumulation).
    w = w_ref[...]
    out = jnp.dot(h.astype(w.dtype), w, preferred_element_type=jnp.float32)
    out = out + b_ref[...]                                    # [TQ, OUT] f32
    o_ref[0] = out.astype(o_ref.dtype)


def dit_final_layer(x, c, params, *, tq=1024, eps=1e-6,
                    stream_dtype=jnp.bfloat16, compute_dtype=jnp.bfloat16,
                    interpret=False):
    """params = (ln_w [1,D], w_lin [D,OUT], b_lin [1,OUT], w_ada [cond,2D], b_ada [1,2D]).

    stream_dtype: dtype x is streamed through HBM as (None = keep x.dtype).
    compute_dtype: dtype of the projection weight on the MXU (None = keep).
    Output dtype matches the incoming x dtype.
    """
    ln_w, w_lin, b_lin, w_ada, b_ada = params
    B, S, D = x.shape
    OUT = w_lin.shape[-1]
    out_dtype = x.dtype

    # ---- adaLN modulation hoisted to XLA (M=1 matmul; keeps W_ada out of the
    # hot kernel's VMEM), with the LN weight folded into a per-batch gamma.
    mod = jnp.dot(c.astype(jnp.float32), w_ada.astype(jnp.float32),
                  preferred_element_type=jnp.float32) + b_ada.astype(jnp.float32)
    shift = mod[:, :D].reshape(B, 1, D)                       # f32 [B,1,D]
    scale = mod[:, D:].reshape(B, 1, D)                       # f32 [B,1,D]
    gamma = ln_w.astype(jnp.float32).reshape(1, 1, D) * (1.0 + scale)  # [B,1,D]

    # ---- stream / compute dtypes.
    x_in = x if stream_dtype is None else x.astype(stream_dtype)
    w_in = w_lin if compute_dtype is None else w_lin.astype(compute_dtype)
    b_in = b_lin.reshape(1, OUT).astype(jnp.float32)

    # ---- S-tile selection.  Cap the x block at ~4 MiB so double-buffered
    # blocks + f32 temporaries stay well inside v7x's scoped VMEM budget.
    itemsize = jnp.dtype(x_in.dtype).itemsize
    max_tq = max(8, ((4 << 20) // (D * itemsize)) // 8 * 8)
    tq = max(8, min(tq, max_tq, S))
    if tq < S:
        tq -= tq % 8                  # (8,128) constraint on second-to-last dim
        if tq == 0:
            tq = S                    # tiny S: full-sequence block is legal
    n_sq = pl.cdiv(S, tq)             # masked tail if tq does not divide S
    # v7x shards "parallel" grid axes across 2 TensorCores; with B == 1 make
    # sure there are at least 2 programs so neither core idles.
    if B == 1 and n_sq == 1 and S >= 16:
        half = (((S + 1) // 2) + 7) // 8 * 8
        if half < S:
            tq = half
            n_sq = pl.cdiv(S, tq)

    kernel = functools.partial(_dit_final_layer_kernel, eps=eps)

    return pl.pallas_call(
        kernel,
        out_shape=jax.ShapeDtypeStruct((B, S, OUT), out_dtype),
        grid=(B, n_sq),
        in_specs=[
            pl.BlockSpec((1, tq, D), lambda b, s: (b, s, 0)),   # x (streamed S-tiles)
            pl.BlockSpec((1, 1, D), lambda b, s: (b, 0, 0)),    # gamma (per batch, f32)
            pl.BlockSpec((1, 1, D), lambda b, s: (b, 0, 0)),    # shift (per batch, f32)
            pl.BlockSpec((D, OUT), lambda b, s: (0, 0)),        # projection weight
            pl.BlockSpec((1, OUT), lambda b, s: (0, 0)),        # projection bias (f32)
        ],
        out_specs=pl.BlockSpec((1, tq, OUT), lambda b, s: (b, s, 0)),
        compiler_params=pltpu.CompilerParams(
            dimension_semantics=("parallel", "parallel"),
            vmem_limit_bytes=48 * 1024 * 1024,
        ),
        interpret=interpret,
    )(x_in, gamma, shift, w_in, b_in)


def dit_final_layer_ref(x, c, params, *, eps=1e-6):
    ln_w, w_lin, b_lin, w_ada, b_ada = params
    D = x.shape[-1]
    mod = (c @ w_ada + b_ada)[:, None, :]                     # [B, 1, 2D]
    shift, scale = mod[..., :D], mod[..., D:]
    mu = x.mean(-1, keepdims=True)
    var = ((x - mu) ** 2).mean(-1, keepdims=True)
    xn = (x - mu) / jnp.sqrt(var + eps) * ln_w
    h = xn * (1.0 + scale) + shift
    return h @ w_lin + b_lin


if __name__ == "__main__":
    B, S, D = 2, 64, 32          # batch, seq, hidden_size
    OUT = 8                      # out_channels
    cond_dim = 16

    key = jax.random.PRNGKey(0)
    keys = jax.random.split(key, 7)

    x = jax.random.normal(keys[0], (B, S, D), dtype=jnp.float32)
    c = jax.random.normal(keys[1], (B, cond_dim), dtype=jnp.float32)

    w = 0.05
    ln_w = 1.0 + 0.1 * jax.random.normal(keys[2], (1, D), dtype=jnp.float32)
    w_lin = w * jax.random.normal(keys[3], (D, OUT), dtype=jnp.float32)
    b_lin = w * jax.random.normal(keys[4], (1, OUT), dtype=jnp.float32)
    # original __init__ zero-inits linear/adaLN; use small random values so the
    # modulation + projection paths are actually exercised.
    w_ada = w * jax.random.normal(keys[5], (cond_dim, 2 * D), dtype=jnp.float32)
    b_ada = w * jax.random.normal(keys[6], (1, 2 * D), dtype=jnp.float32)

    params = (ln_w, w_lin, b_lin, w_ada, b_ada)
    ref = dit_final_layer_ref(x, c, params)

    # 1) f32 end-to-end with a non-dividing S tile (exercises the masked-tail
    #    path of the pl.cdiv grid: tiles of 24, 24, 16 rows).
    out_f32 = jax.block_until_ready(
        dit_final_layer(x, c, params, tq=24, stream_dtype=None, compute_dtype=None))
    assert out_f32.shape == (B, S, OUT)
    err = jnp.max(jnp.abs(out_f32 - ref))
    assert jnp.allclose(out_f32, ref, rtol=5e-3, atol=5e-3), f"f32 max abs err = {err}"

    # 2) Default fast path: bf16 streaming of x + bf16 MXU weights (f32 accum).
    out_bf16 = jax.block_until_ready(dit_final_layer(x, c, params, tq=32))
    assert out_bf16.shape == (B, S, OUT) and out_bf16.dtype == x.dtype
    err = jnp.max(jnp.abs(out_bf16 - ref))
    assert jnp.allclose(out_bf16, ref, rtol=2e-2, atol=2e-2), f"bf16 max abs err = {err}"

    print("KERNEL_OK")
</pallas_src>

<mosaic_0001>
module attributes {stable_mosaic.version = 11 : i64} {
  func.func @_dit_final_layer_kernel(%arg0: i32, %arg1: i32, %arg2: memref<1x24x32xf32, #tpu.memory_space<vmem>>, %arg3: memref<1x1x32xf32, #tpu.memory_space<vmem>>, %arg4: memref<1x1x32xf32, #tpu.memory_space<vmem>>, %arg5: memref<32x8xf32, #tpu.memory_space<vmem>>, %arg6: memref<1x8xf32, #tpu.memory_space<vmem>>, %arg7: memref<1x24x8xf32, #tpu.memory_space<vmem>>) attributes {dimension_semantics = [#tpu.dimension_semantics<parallel>, #tpu.dimension_semantics<parallel>], iteration_bounds = array<i64: 2, 3>, scalar_prefetch = 0 : i64, scratch_operands = 0 : i64, tpu.core_type = #tpu.core_type<tc>, window_params = [{transform_indices = @transform_0, window_bounds = array<i64: 1, 24, 32>}, {transform_indices = @transform_1, window_bounds = array<i64: 1, 1, 32>}, {transform_indices = @transform_2, window_bounds = array<i64: 1, 1, 32>}, {pipeline_mode = #tpu.pipeline_mode<synchronous>, transform_indices = @transform_3, window_bounds = array<i64: 32, 8>}, {pipeline_mode = #tpu.pipeline_mode<synchronous>, transform_indices = @transform_4, window_bounds = array<i64: 1, 8>}, {transform_indices = @transform_5, window_bounds = array<i64: 1, 24, 8>}]} {
    %c0 = arith.constant 0 : index
    %c0_0 = arith.constant 0 : index
    %c0_1 = arith.constant 0 : index
    %0 = vector.load %arg2[%c0, %c0_0, %c0_1] : memref<1x24x32xf32, #tpu.memory_space<vmem>>, vector<1x24x32xf32>
    %1 = vector.shape_cast %0 : vector<1x24x32xf32> to vector<24x32xf32>
    %cst = arith.constant dense<0.000000e+00> : vector<24xf32>
    %2 = vector.multi_reduction <add>, %1, %cst [1] : vector<24x32xf32> to vector<24xf32>
    %3 = vector.shape_cast %2 : vector<24xf32> to vector<24x1xf32>
    %cst_2 = arith.constant 3.200000e+01 : f32
    %4 = vector.broadcast %cst_2 : f32 to vector<24x1xf32>
    %5 = arith.divf %3, %4 : vector<24x1xf32>
    %6 = arith.mulf %1, %1 : vector<24x32xf32>
    %cst_3 = arith.constant dense<0.000000e+00> : vector<24xf32>
    %7 = vector.multi_reduction <add>, %6, %cst_3 [1] : vector<24x32xf32> to vector<24xf32>
    %8 = vector.shape_cast %7 : vector<24xf32> to vector<24x1xf32>
    %cst_4 = arith.constant 3.200000e+01 : f32
    %9 = vector.broadcast %cst_4 : f32 to vector<24x1xf32>
    %10 = arith.divf %8, %9 : vector<24x1xf32>
    %11 = arith.mulf %5, %5 : vector<24x1xf32>
    %12 = arith.subf %10, %11 : vector<24x1xf32>
    %cst_5 = arith.constant 0.000000e+00 : f32
    %13 = vector.broadcast %cst_5 : f32 to vector<24x1xf32>
    %14 = arith.maximumf %12, %13 : vector<24x1xf32>
    %cst_6 = arith.constant 9.99999997E-7 : f32
    %15 = vector.broadcast %cst_6 : f32 to vector<24x1xf32>
    %16 = arith.addf %14, %15 : vector<24x1xf32>
    %17 = math.rsqrt %16 : vector<24x1xf32>
    %18 = vector.broadcast %5 : vector<24x1xf32> to vector<24x32xf32>
    %19 = arith.subf %1, %18 : vector<24x32xf32>
    %20 = vector.broadcast %17 : vector<24x1xf32> to vector<24x32xf32>
    %21 = arith.mulf %19, %20 : vector<24x32xf32>
    %c0_7 = arith.constant 0 : index
    %c0_8 = arith.constant 0 : index
    %c0_9 = arith.constant 0 : index
    %22 = vector.load %arg3[%c0_7, %c0_8, %c0_9] : memref<1x1x32xf32, #tpu.memory_space<vmem>>, vector<1x1x32xf32>
    %23 = vector.shape_cast %22 : vector<1x1x32xf32> to vector<1x32xf32>
    %24 = vector.broadcast %23 : vector<1x32xf32> to vector<24x32xf32>
    %25 = arith.mulf %21, %24 : vector<24x32xf32>
    %c0_10 = arith.constant 0 : index
    %c0_11 = arith.constant 0 : index
    %c0_12 = arith.constant 0 : index
    %26 = vector.load %arg4[%c0_10, %c0_11, %c0_12] : memref<1x1x32xf32, #tpu.memory_space<vmem>>, vector<1x1x32xf32>
    %27 = vector.shape_cast %26 : vector<1x1x32xf32> to vector<1x32xf32>
    %28 = vector.broadcast %27 : vector<1x32xf32> to vector<24x32xf32>
    %29 = arith.addf %25, %28 : vector<24x32xf32>
    %c0_13 = arith.constant 0 : index
    %c0_14 = arith.constant 0 : index
    %30 = vector.load %arg5[%c0_13, %c0_14] : memref<32x8xf32, #tpu.memory_space<vmem>>, vector<32x8xf32>
    %cst_15 = arith.constant dense<0.000000e+00> : vector<24x8xf32>
    %31 = tpu.matmul %29, %30, %cst_15 {dimension_numbers = #tpu.dot_dimension_numbers<[1], [0], [0], [1], [0, 0, 1, 1], [], []>} : vector<24x32xf32>, vector<32x8xf32>, vector<24x8xf32> -> vector<24x8xf32>
    %c0_16 = arith.constant 0 : index
    %c0_17 = arith.constant 0 : index
    %32 = vector.load %arg6[%c0_16, %c0_17] : memref<1x8xf32, #tpu.memory_space<vmem>>, vector<1x8xf32>
    %33 = vector.broadcast %32 : vector<1x8xf32> to vector<24x8xf32>
    %34 = arith.addf %31, %33 : vector<24x8xf32>
    %c0_18 = arith.constant 0 : index
    %c0_19 = arith.constant 0 : index
    %c0_20 = arith.constant 0 : index
    %35 = vector.load %arg7[%c0_18, %c0_19, %c0_20] : memref<1x24x8xf32, #tpu.memory_space<vmem>>, vector<1x24x8xf32>
    %36 = vector.shape_cast %35 : vector<1x24x8xf32> to vector<24x8xf32>
    %37 = vector.shape_cast %34 : vector<24x8xf32> to vector<1x24x8xf32>
    tpu.vector_store %arg7[%c0_18, %c0_19, %c0_20], %37 {strides = array<i32>} : memref<1x24x8xf32, #tpu.memory_space<vmem>>, vector<1x24x8xf32>,
    return
  }
  func.func @transform_0(%arg0: i32, %arg1: i32) -> (i32, i32, i32) {
    %c0_i32 = arith.constant 0 : i32
    %c0_i32_0 = arith.constant 0 : i32
    return %arg0, %arg1, %c0_i32 : i32, i32, i32
  }
  func.func @transform_1(%arg0: i32, %arg1: i32) -> (i32, i32, i32) {
    %c0_i32 = arith.constant 0 : i32
    %c0_i32_0 = arith.constant 0 : i32
    %c0_i32_1 = arith.constant 0 : i32
    return %arg0, %c0_i32, %c0_i32_0 : i32, i32, i32
  }
  func.func @transform_2(%arg0: i32, %arg1: i32) -> (i32, i32, i32) {
    %c0_i32 = arith.constant 0 : i32
    %c0_i32_0 = arith.constant 0 : i32
    %c0_i32_1 = arith.constant 0 : i32
    return %arg0, %c0_i32, %c0_i32_0 : i32, i32, i32
  }
  func.func @transform_3(%arg0: i32, %arg1: i32) -> (i32, i32) {
    %c0_i32 = arith.constant 0 : i32
    %c0_i32_0 = arith.constant 0 : i32
    %c0_i32_1 = arith.constant 0 : i32
    return %c0_i32, %c0_i32_0 : i32, i32
  }
  func.func @transform_4(%arg0: i32, %arg1: i32) -> (i32, i32) {
    %c0_i32 = arith.constant 0 : i32
    %c0_i32_0 = arith.constant 0 : i32
    %c0_i32_1 = arith.constant 0 : i32
    return %c0_i32, %c0_i32_0 : i32, i32
  }
  func.func @transform_5(%arg0: i32, %arg1: i32) -> (i32, i32, i32) {
    %c0_i32 = arith.constant 0 : i32
    %c0_i32_0 = arith.constant 0 : i32
    return %arg0, %arg1, %c0_i32 : i32, i32, i32
  }
}

</mosaic_0001>

<llo_original>
// kernel: tpu_custom_call.1
$region0: #{tpu_custom_call.1}
  #allocation0 [shape = 'u32[]', space=smem, size = 0x4, offset = 0x4, fixed_abs, tag = 'smem constant byte address 0x4 - core index']
  #allocation1 [shape = 'u32[144,128]{1,0:T(1,128)}', space=vmem, size = 0x12000, scoped, tag = 'internal scratch']
  %s0 = inlined_call_operand.vmem [shape: f32[2,64,32], index: 0, kind: input, shape index: {}]
  %s1 = inlined_call_operand.vmem [shape: f32[2,1,32], index: 1, kind: input, shape index: {}]
  %s2 = inlined_call_operand.vmem [shape: f32[2,1,32], index: 2, kind: input, shape index: {}]
  %s3 = inlined_call_operand.vmem [shape: f32[32,8], index: 3, kind: input, shape index: {}]
  %s4 = inlined_call_operand.vmem [shape: f32[1,8], index: 4, kind: input, shape index: {}]
  %s5 = inlined_call_operand.vmem [shape: f32[2,64,8], index: 5, kind: output, shape index: {}]
  %s6 = sld [smem:[#allocation0]]
  $region101: #{tpu_custom_call.1} parent=0
    _
  %s8 = ssub.s32 1, %s6
  %s9 = scalar_select 0, %s8, %s6
  $region1: #{tpu_custom_call.1} parent=0
    #allocation2 [shape = 'u8[24576]{0}', space=vmem, size = 0x6000, scoped, tag = 'output window, operand 0']
    loop: start=0, step=1, limit=8
    $region2: #{tpu_custom_call.1} parent=1 // loop_pre_header
      _
    $region3: #{tpu_custom_call.1} parent=1 // loop_header
      %s11 = sphi 0, %s15
      %p12 = scmp.ge.s32.totalorder %s11, 8
      %s18 = sphi 0, %s30
      %s19 = sphi 0, %s26
      %s20 = sphi 0, %s18
      %s21 = sphi 0, %s19
      %s22 = sphi 0, %s20
      %s23 = sphi 0, %s21
      %s35 = sphi 0, %s37
      %s38 = sphi 0, %s35
      %s39 = sphi 0, %s38
      %s55 = sphi 0, %s39
      %s61 = sphi 0, %s63
      %s64 = sphi 0, %s61
      %s65 = sphi 0, %s64
      %s81 = sphi 0, %s65
      %s87 = sphi 0, %s89
      %s90 = sphi 0, %s87
      %s91 = sphi 0, %s90
      %s107 = sphi 0, %s91
      %s111 = sphi 0, %s111
      %s113 = sphi 0, %s111
      %s114 = sphi 0, %s113
      %s128 = sphi 0, %s114
      %s132 = sphi 0, %s132
      %s134 = sphi 0, %s132
      %s135 = sphi 0, %s134
      %s149 = sphi 0, %s135
      %s157 = sphi 0, %s159
      %s160 = sphi 0, %s157
      %s161 = sphi 0, %s160
      %s177 = sphi 0, %s161
    $region4: #{tpu_custom_call.1} parent=1 // loop_header_branch
      %14 = sbr.rel (%p12) target = $region8
    $region5: #{tpu_custom_call.1} parent=1 // loop_body
      %s16 = ssub.s32 %s11, 1
      %s17 = ssub.s32 %s11, 2
      %s24 = sadd.s32 1, %s19
      %p25 = scmp.ge.s32.totalorder %s24, 3
      %s26 = scalar_select %p25, 0, %s24
      %s27 = sadd.s32 1, %s18
      %s28 = scalar_select %p25, %s27, %s18
      %p29 = scmp.ge.s32.totalorder %s28, 2
      %s30 = scalar_select %p29, 0, %s28
      %s31 = ssub.s32 %s18, %s30
      %s32 = ssub.s32 %s19, %s26
      %s33 = sor.u32 %s31, %s32
      %p34 = scmp.eq.s32.totalorder %s33, 0
      %s36 = sadd.s32 %s35, 1
      %s37 = scalar_select %p34, %s35, %s36
      %p40 = pneg %p34
      %p41 = scmp.eq.s32.totalorder %s11, 5
      %p42 = por %p40, %p41
      %p43 = scmp.ne.s32.totalorder %s35, %s38
      %p44 = scmp.eq.s32.totalorder %s11, 0
      %p45 = por %p43, %p44
      %p46 = scmp.ne.s32.totalorder %s35, %s38
      %p47 = scmp.eq.s32.totalorder %s16, 5
      %p48 = por %p46, %p47
      %p49 = scmp.ne.s32.totalorder %s38, %s39
      %p50 = scmp.eq.s32.totalorder %s16, 0
      %p51 = por %p49, %p50
      %p52 = scmp.ne.s32.totalorder %s38, %s39
      %p53 = scmp.eq.s32.totalorder %s17, 5
      %p54 = por %p52, %p53
      %p56 = scmp.ne.s32.totalorder %s39, %s55
      %p57 = scmp.eq.s32.totalorder %s17, 0
      %p58 = por %p56, %p57
      %s59 = ssub.s32 %s18, %s30
      %p60 = scmp.eq.s32.totalorder %s59, 0
      %s62 = sadd.s32 %s61, 1
      %s63 = scalar_select %p60, %s61, %s62
      %p66 = pneg %p60
      %p67 = scmp.eq.s32.totalorder %s11, 5
      %p68 = por %p66, %p67
      %p69 = scmp.ne.s32.totalorder %s61, %s64
      %p70 = scmp.eq.s32.totalorder %s11, 0
      %p71 = por %p69, %p70
      %p72 = scmp.ne.s32.totalorder %s61, %s64
      %p73 = scmp.eq.s32.totalorder %s16, 5
      %p74 = por %p72, %p73
      %p75 = scmp.ne.s32.totalorder %s64, %s65
      %p76 = scmp.eq.s32.totalorder %s16, 0
      %p77 = por %p75, %p76
      %p78 = scmp.ne.s32.totalorder %s64, %s65
      %p79 = scmp.eq.s32.totalorder %s17, 5
      %p80 = por %p78, %p79
      %p82 = scmp.ne.s32.totalorder %s65, %s81
      %p83 = scmp.eq.s32.totalorder %s17, 0
      %p84 = por %p82, %p83
      %s85 = ssub.s32 %s18, %s30
      %p86 = scmp.eq.s32.totalorder %s85, 0
      %s88 = sadd.s32 %s87, 1
      %s89 = scalar_select %p86, %s87, %s88
      %p92 = pneg %p86
      %p93 = scmp.eq.s32.totalorder %s11, 5
      %p94 = por %p92, %p93
      %p95 = scmp.ne.s32.totalorder %s87, %s90
      %p96 = scmp.eq.s32.totalorder %s11, 0
      %p97 = por %p95, %p96
      %p98 = scmp.ne.s32.totalorder %s87, %s90
      %p99 = scmp.eq.s32.totalorder %s16, 5
      %p100 = por %p98, %p99
      %p101 = scmp.ne.s32.totalorder %s90, %s91
      %p102 = scmp.eq.s32.totalorder %s16, 0
      %p103 = por %p101, %p102
      %p104 = scmp.ne.s32.totalorder %s90, %s91
      %p105 = scmp.eq.s32.totalorder %s17, 5
      %p106 = por %p104, %p105
      %p108 = scmp.ne.s32.totalorder %s91, %s107
      %p109 = scmp.eq.s32.totalorder %s17, 0
      %p110 = por %p108, %p109
      %s112 = sadd.s32 %s111, 1
      %p115 = scmp.eq.s32.totalorder %s11, 5
      %p116 = scmp.ne.s32.totalorder %s111, %s113
      %p117 = scmp.eq.s32.totalorder %s11, 0
      %p118 = por %p116, %p117
      %p119 = scmp.ne.s32.totalorder %s111, %s113
      %p120 = scmp.eq.s32.totalorder %s16, 5
      %p121 = por %p119, %p120
      %p122 = scmp.ne.s32.totalorder %s113, %s114
      %p123 = scmp.eq.s32.totalorder %s16, 0
      %p124 = por %p122, %p123
      %p125 = scmp.ne.s32.totalorder %s113, %s114
      %p126 = scmp.eq.s32.totalorder %s17, 5
      %p127 = por %p125, %p126
      %p129 = scmp.ne.s32.totalorder %s114, %s128
      %p130 = scmp.eq.s32.totalorder %s17, 0
      %p131 = por %p129, %p130
      %s133 = sadd.s32 %s132, 1
      %p136 = scmp.eq.s32.totalorder %s11, 5
      %p137 = scmp.ne.s32.totalorder %s132, %s134
      %p138 = scmp.eq.s32.totalorder %s11, 0
      %p139 = por %p137, %p138
      %p140 = scmp.ne.s32.totalorder %s132, %s134
      %p141 = scmp.eq.s32.totalorder %s16, 5
      %p142 = por %p140, %p141
      %p143 = scmp.ne.s32.totalorder %s134, %s135
      %p144 = scmp.eq.s32.totalorder %s16, 0
      %p145 = por %p143, %p144
      %p146 = scmp.ne.s32.totalorder %s134, %s135
      %p147 = scmp.eq.s32.totalorder %s17, 5
      %p148 = por %p146, %p147
      %p150 = scmp.ne.s32.totalorder %s135, %s149
      %p151 = scmp.eq.s32.totalorder %s17, 0
      %p152 = por %p150, %p151
      %s153 = ssub.s32 %s18, %s30
      %s154 = ssub.s32 %s19, %s26
      %s155 = sor.u32 %s153, %s154
      %p156 = scmp.eq.s32.totalorder %s155, 0
      %s158 = sadd.s32 %s157, 1
      %s159 = scalar_select %p156, %s157, %s158
      %p162 = pneg %p156
      %p163 = scmp.eq.s32.totalorder %s11, 5
      %p164 = por %p162, %p163
      %p165 = scmp.ne.s32.totalorder %s157, %s160
      %p166 = scmp.eq.s32.totalorder %s11, 0
      %p167 = por %p165, %p166
      %p168 = scmp.ne.s32.totalorder %s157, %s160
      %p169 = scmp.eq.s32.totalorder %s16, 5
      %p170 = por %p168, %p169
      %p171 = scmp.ne.s32.totalorder %s160, %s161
      %p172 = scmp.eq.s32.totalorder %s16, 0
      %p173 = por %p171, %p172
      %p174 = scmp.ne.s32.totalorder %s160, %s161
      %p175 = scmp.eq.s32.totalorder %s17, 5
      %p176 = por %p174, %p175
      %p178 = scmp.ne.s32.totalorder %s161, %s177
      %p179 = scmp.eq.s32.totalorder %s17, 0
      %p180 = por %p178, %p179
      %p181 = scmp.le.s32.totalorder 1, %s11
      %p182 = scmp.lt.s32.totalorder %s11, 7
      %p183 = pnand %p181, %p182
      %p184 = pneg %p183
      // Predicated region
      $region9: #{tpu_custom_call.1} parent=5 // pred_check
        _
      $region10: #{tpu_custom_call.1} parent=5 // pred_check_branch
        %186 = sbr.rel (%p183) target = $region12
      $region11: #{tpu_custom_call.1} parent=5 // pred_region
        %s187 = ssub.s32 %s11, 1
        // Predicated region
        $region13: #{tpu_custom_call.1} parent=11 // pred_check
          %p188 = pneg %p124
        $region14: #{tpu_custom_call.1} parent=11 // pred_check_branch
          %190 = sbr.rel (%p188) target = $region16
        $region15: #{tpu_custom_call.1} parent=11 // pred_region
          _
        $region16: #{tpu_custom_call.1} parent=11 // pred_fallthru
          _
        // Predicated region
        $region17: #{tpu_custom_call.1} parent=11 // pred_check
          %p191 = pneg %p145
        $region18: #{tpu_custom_call.1} parent=11 // pred_check_branch
          %193 = sbr.rel (%p191) target = $region20
        $region19: #{tpu_custom_call.1} parent=11 // pred_region
          _
        $region20: #{tpu_custom_call.1} parent=11 // pred_fallthru
          _
      $region12: #{tpu_custom_call.1} parent=5 // pred_fallthru
        _
      %p194 = scmp.lt.s32.totalorder %s11, 6
      // Predicated region
      $region21: #{tpu_custom_call.1} parent=5 // pred_check
        %p195 = pneg %p194
      $region22: #{tpu_custom_call.1} parent=5 // pred_check_branch
        %197 = sbr.rel (%p195) target = $region24
      $region23: #{tpu_custom_call.1} parent=5 // pred_region
        // Predicated region
        $region25: #{tpu_custom_call.1} parent=23 // pred_check
          %p198 = pneg %p45
        $region26: #{tpu_custom_call.1} parent=23 // pred_check_branch
          %200 = sbr.rel (%p198) target = $region28
        $region27: #{tpu_custom_call.1} parent=23 // pred_region
          %s201 = smul.u32 3, %s19
          %s202 = ssub.s32 8, %s201
          %p203 = scmp.lt.s32.totalorder %s202, 3
          %s204 = scalar_select %p203, %s202, 3
          %s205 = smul.u32 128, %s204
          %p206 = scmp.lt.s32.totalorder %s18, 1
          %s207 = scalar_select %p206, %s18, 1
          %p208 = scmp.lt.s32.totalorder %s201, 7
          %s209 = scalar_select %p208, %s201, 7
          %s210 = smul.addr %s207, 8
          %s211 = sadd.s32 %s209, %s210
          %s212 = smul.addr %s211, 8
          %s213 = scalar_lea.vmem %s0, %s212
          %s214 = smul.u32 3, %s19
          %s215 = ssub.s32 8, %s214
          %p216 = scmp.lt.s32.totalorder %s215, 3
          %s217 = scalar_select %p216, %s215, 3
          %s218 = smul.u32 128, %s217
        $region28: #{tpu_custom_call.1} parent=23 // pred_fallthru
          _
        // Predicated region
        $region29: #{tpu_custom_call.1} parent=23 // pred_check
          %p219 = pneg %p71
        $region30: #{tpu_custom_call.1} parent=23 // pred_check_branch
          %221 = sbr.rel (%p219) target = $region32
        $region31: #{tpu_custom_call.1} parent=23 // pred_region
          %p222 = scmp.lt.s32.totalorder %s18, 1
          %s223 = scalar_select %p222, %s18, 1
          %s224 = scalar_lea.vmem %s1, %s223
        $region32: #{tpu_custom_call.1} parent=23 // pred_fallthru
          _
        // Predicated region
        $region33: #{tpu_custom_call.1} parent=23 // pred_check
          %p225 = pneg %p97
        $region34: #{tpu_custom_call.1} parent=23 // pred_check_branch
          %227 = sbr.rel (%p225) target = $region36
        $region35: #{tpu_custom_call.1} parent=23 // pred_region
          %p228 = scmp.lt.s32.totalorder %s18, 1
          %s229 = scalar_select %p228, %s18, 1
          %s230 = scalar_lea.vmem %s2, %s229
        $region36: #{tpu_custom_call.1} parent=23 // pred_fallthru
          _
      $region24: #{tpu_custom_call.1} parent=5 // pred_fallthru
        _
      %p231 = scmp.le.s32.totalorder 1, %s11
      %p232 = scmp.lt.s32.totalorder %s11, 7
      %p233 = pnand %p231, %p232
      %p234 = pneg %p233
      // Predicated region
      $region37: #{tpu_custom_call.1} parent=5 // pred_check
        _
      $region38: #{tpu_custom_call.1} parent=5 // pred_check_branch
        %236 = sbr.rel (%p233) target = $region40
      $region39: #{tpu_custom_call.1} parent=5 // pred_region
        %s237 = ssub.s32 %s11, 1
        %s238 = smul.u32 3, %s21
        %s239 = ssub.s32 8, %s238
        %p240 = scmp.lt.s32.totalorder %s239, 3
        %s241 = scalar_select %p240, %s239, 3
        %s242 = smul.u32 128, %s241
        %p243 = scmp.lt.s32.totalorder %s20, 1
        %s244 = scalar_select %p243, %s20, 1
        %p245 = scmp.lt.s32.totalorder %s238, 7
        %s246 = scalar_select %p245, %s238, 7
        %s247 = smul.addr %s244, 8
        %s248 = sadd.s32 %s246, %s247
        %s249 = smul.addr %s248, 8
        %s250 = scalar_lea.vmem %s0, %s249
        %p251 = pneg %p51
        %p252 = pneg %p48
        %p253 = scmp.lt.s32.totalorder %s20, 1
        %s254 = scalar_select %p253, %s20, 1
        %s255 = scalar_lea.vmem %s1, %s254
        %p256 = pneg %p77
        %p257 = pneg %p74
        %p258 = scmp.lt.s32.totalorder %s20, 1
        %s259 = scalar_select %p258, %s20, 1
        %s260 = scalar_lea.vmem %s2, %s259
        %p261 = pneg %p103
        %p262 = pneg %p100
        %p263 = pneg %p124
        %p264 = pneg %p121
        %p265 = pneg %p145
        %p266 = pneg %p142
        %p267 = pneg %p173
        %p268 = pneg %p170
        %s269 = sand.u32 %s160, 1
        %s270 = sand.u32 %s160, 1
        %s271 = smul.addr %s270, 24
        %s272 = scalar_lea.vmem [#allocation2], %s271
        %s273 = smul.u32 3, %s21
        %s274 = ssub.s32 8, %s273
        %p275 = scmp.lt.s32.totalorder %s274, 3
        %s276 = scalar_select %p275, %s274, 3
        %s277 = smul.u32 128, %s276
        %p278 = scmp.lt.s32.totalorder %s20, 1
        %s279 = scalar_select %p278, %s20, 1
        %p280 = scmp.lt.s32.totalorder %s273, 7
        %s281 = scalar_select %p280, %s273, 7
        %s282 = smul.addr %s279, 8
        %s283 = sadd.s32 %s281, %s282
        %s284 = smul.addr %s283, 8
        %s285 = scalar_lea.vmem %s0, %s284
        %s286 = smul.u32 3, %s21
        %s287 = ssub.s32 8, %s286
        %p288 = scmp.lt.s32.totalorder %s287, 3
        %s289 = scalar_select %p288, %s287, 3
        %s290 = smul.u32 128, %s289
        %p291 = scmp.lt.s32.totalorder %s20, 1
        %s292 = scalar_select %p291, %s20, 1
        %s293 = scalar_lea.vmem %s1, %s292
        %p294 = scmp.lt.s32.totalorder %s20, 1
        %s295 = scalar_select %p294, %s20, 1
        %s296 = scalar_lea.vmem %s2, %s295
        %s297 = smul.u32 3, %s21
        %s298 = ssub.s32 8, %s297
        %p299 = scmp.lt.s32.totalorder %s298, 3
        %s300 = scalar_select %p299, %s298, 3
        %s301 = smul.u32 128, %s300
        %v302 = vld [vmem:[%s285] sm:$0xff]
        %v303 = vld [vmem:[%s285 + $0x8] sm:$0xff]
        %v304 = vld [vmem:[%s285 + $0x10] sm:$0xff]
        %vm305 = vcmask 261120
        %v306 = vsel %vm305, %v302, 0.0
        %307 = vadd.xlane.f32.xlu0 %v306
        %v308 = vpop.xlane.xlu0 %307
        %v309 = vsel %vm305, %v303, 0.0
        %310 = vadd.xlane.f32.xlu0 %v309
        %v311 = vpop.xlane.xlu0 %310
        %v312 = vsel %vm305, %v304, 0.0
        %313 = vadd.xlane.f32.xlu0 %v312
        %v314 = vpop.xlane.xlu0 %313
        %v315 = vrcp.pop 32.0
        %v316 = vmul.f32 %v308, %v315
        %v317 = vmul.f32 %v311, %v315
        %v318 = vmul.f32 %v314, %v315
        %v319 = vmul.f32 %v302, %v302
        %v320 = vmul.f32 %v303, %v303
        %v321 = vmul.f32 %v304, %v304
        %v322 = vsel %vm305, %v319, 0.0
        %323 = vadd.xlane.f32.xlu0 %v322
        %v324 = vpop.xlane.xlu0 %323
        %v325 = vsel %vm305, %v320, 0.0
        %326 = vadd.xlane.f32.xlu0 %v325
        %v327 = vpop.xlane.xlu0 %326
        %v328 = vsel %vm305, %v321, 0.0
        %329 = vadd.xlane.f32.xlu0 %v328
        %v330 = vpop.xlane.xlu0 %329
        %v331 = vmul.f32 %v324, %v315
        %v332 = vmul.f32 %v327, %v315
        %v333 = vmul.f32 %v330, %v315
        %v334 = vmul.f32 %v316, %v316
        %v335 = vmul.f32 %v317, %v317
        %v336 = vmul.f32 %v318, %v318
        %v337 = vsub.f32 %v331, %v334
        %v338 = vsub.f32 %v332, %v335
        %v339 = vsub.f32 %v333, %v336
        %v340 = vmax.f32 %v337, 0.0
        %v341 = vmax.f32 %v338, 0.0
        %v342 = vmax.f32 %v339, 0.0
        %v343 = vadd.f32 %v340, 1e-06
        %v344 = vadd.f32 %v341, 1e-06
        %v345 = vadd.f32 %v342, 1e-06
        %v346 = vrsqrt.pop %v343
        %v347 = vrsqrt.pop %v344
        %v348 = vrsqrt.pop %v345
        %v349 = vsub.f32 %v302, %v316
        %v350 = vsub.f32 %v303, %v317
        %v351 = vsub.f32 %v304, %v318
        %v352 = vmul.f32 %v349, %v346
        %v353 = vmul.f32 %v350, %v347
        %v354 = vmul.f32 %v351, %v348
        %v355 = vld [vmem:[%s293] sm:$0x1]
        %v357 = vlaneseq
        %v358 = vshrl.u32 %v357, 7
        %v359 = vsub.s32 0, %v358
        %v360 = vrot.slane %v355, %v359
        %v362 = vmul.f32 %v352, %v360
        %v363 = vmul.f32 %v353, %v360
        %v364 = vmul.f32 %v354, %v360
        %v365 = vld [vmem:[%s296] sm:$0x1]
        %v367 = vlaneseq
        %v368 = vshrl.u32 %v367, 7
        %v369 = vsub.s32 0, %v368
        %v370 = vrot.slane %v365, %v369
        %v372 = vadd.f32 %v362, %v370
        %v373 = vadd.f32 %v363, %v370
        %v374 = vadd.f32 %v364, %v370
        %v375 = vld [vmem:[%s3] sm:$0xff]
        %v376 = vld [vmem:[%s3 + $0x8] sm:$0xff]
        %v377 = vld [vmem:[%s3 + $0x10] sm:$0xff]
        %v378 = vld [vmem:[%s3 + $0x18] sm:$0xff]
        %v379 = vld [vmem:[%s4] sm:$0x1]
        %v381 = vlaneseq
        %v382 = vshrl.u32 %v381, 7
        %v383 = vsub.s32 0, %v382
        %v384 = vrot.slane %v379, %v383
        %v387 = vsel %vm305, %v372, 0
        %v390 = vsel %vm305, %v373, 0
        %v393 = vsel %vm305, %v374, 0
        %395 = vmatprep.subr.mxu0 0.0
        %396 = vmatpush1.msra.mxu0 0.0
        %397 = vmatprep.subr.mxu0 0.0
        %398 = vmatpush1.msra.mxu0 0.0
        %399 = vmatprep.subr.mxu0 0.0
        %400 = vmatpush1.msra.mxu0 0.0
        %401 = vmatprep.subr.mxu0 0.0
        %402 = vmatpush1.msra.mxu0 0.0
        %403 = vmatprep.subr.mxu0 0.0
        %404 = vmatpush1.msra.mxu0 0.0
        %405 = vmatprep.subr.mxu0 0.0
        %406 = vmatpush1.msra.mxu0 0.0
        %407 = vmatprep.subr.mxu0 0.0
        %408 = vmatpush1.msra.mxu0 0.0
        %409 = vmatprep.subr.mxu0 0.0
        %410 = vmatpush1.msra.mxu0 0.0
        %411 = vmatprep.subr.mxu0 0.0
        %412 = vmatpush1.msra.mxu0 0.0
        %413 = vmatprep.subr.mxu0 0.0
        %414 = vmatpush1.msra.mxu0 0.0
        %415 = vmatprep.subr.mxu0 0.0
        %416 = vmatpush1.msra.mxu0 0.0
        %417 = vmatprep.subr.mxu0 0.0
        %418 = vmatpush1.msra.mxu0 0.0
        %419 = vmatprep.subr.mxu0 0.0
        %420 = vmatpush1.msra.mxu0 %v378
        %421 = vmatprep.subr.mxu0 0.0
        %422 = vmatpush1.msra.mxu0 %v377
        %423 = vmatprep.subr.mxu0 0.0
        %424 = vmatpush1.msra.mxu0 %v376
        %425 = vmatprep.subr.mxu0 0.0
        %426 = vmatpush1.msra.mxu0 %v375
        %427 = vmatprep.subr.mxu0 0.0
        %428 = vmatpush2.msra.mxu0 0.0
        %429 = vmatprep.subr.mxu0 0.0
        %430 = vmatpush2.msra.mxu0 0.0
        %431 = vmatprep.subr.mxu0 0.0
        %432 = vmatpush2.msra.mxu0 0.0
        %433 = vmatprep.subr.mxu0 0.0
        %434 = vmatpush2.msra.mxu0 0.0
        %435 = vmatprep.subr.mxu0 0.0
        %436 = vmatpush2.msra.mxu0 0.0
        %437 = vmatprep.subr.mxu0 0.0
        %438 = vmatpush2.msra.mxu0 0.0
        %439 = vmatprep.subr.mxu0 0.0
        %440 = vmatpush2.msra.mxu0 0.0
        %441 = vmatprep.subr.mxu0 0.0
        %442 = vmatpush2.msra.mxu0 0.0
        %443 = vmatprep.subr.mxu0 0.0
        %444 = vmatpush2.msra.mxu0 0.0
        %445 = vmatprep.subr.mxu0 0.0
        %446 = vmatpush2.msra.mxu0 0.0
        %447 = vmatprep.subr.mxu0 0.0
        %448 = vmatpush2.msra.mxu0 0.0
        %449 = vmatprep.subr.mxu0 0.0
        %450 = vmatpush2.msra.mxu0 0.0
        %451 = vmatprep.subr.mxu0 0.0
        %452 = vmatpush2.msra.mxu0 0.0
        %453 = vmatprep.subr.mxu0 0.0
        %454 = vmatpush2.msra.mxu0 0.0
        %455 = vmatprep.subr.mxu0 0.0
        %456 = vmatpush2.msra.mxu0 0.0
        %457 = vmatprep.subr.mxu0 0.0
        %458 = vmatpush2.msra.mxu0 0.0
        %459 = vmatprep.mubr.f32.mxu0 0.0
        %460 = vmatmul.mubr.f32.gmra.mxu0 %v387
        %v461 = vpop.f32.mrf.mxu0
        %v462 = vadd.f32 %v384, %v461
        %v463 = vpop.f32.mrf.mxu0
        %464 = vmatprep.mubr.f32.mxu0 0.0
        %465 = vmatmul.mubr.f32.gmra.mxu0 %v390
        %v466 = vpop.f32.mrf.mxu0
        %v467 = vadd.f32 %v384, %v466
        %v468 = vpop.f32.mrf.mxu0
        %469 = vmatprep.mubr.f32.mxu0 0.0
        %470 = vmatmul.mubr.f32.gmra.mxu0 %v393
        %v471 = vpop.f32.mrf.mxu0
        %v472 = vadd.f32 %v384, %v471
        %v473 = vpop.f32.mrf.mxu0
        %474 = vdwg.mxu0
        %vm475 = vcmask 64512
        %476 = vst.msk [vmem:[%s272] sm:$0xff] %vm475, %v462
        %477 = vst.msk [vmem:[%s272 + $0x8] sm:$0xff] %vm475, %v467
        %478 = vst.msk [vmem:[%s272 + $0x10] sm:$0xff] %vm475, %v472
        %s479 = sand.u32 %s160, 1
        %s480 = sand.u32 %s160, 1
        %s481 = smul.addr %s480, 24
        %s482 = scalar_lea.vmem [#allocation2], %s481
        // Predicated region
        $region41: #{tpu_custom_call.1} parent=39 // pred_check
          %p483 = pneg %p170
        $region42: #{tpu_custom_call.1} parent=39 // pred_check_branch
          %485 = sbr.rel (%p483) target = $region44
        $region43: #{tpu_custom_call.1} parent=39 // pred_region
          %s486 = smul.u32 3, %s21
          %s487 = ssub.s32 8, %s486
          %p488 = scmp.lt.s32.totalorder %s487, 3
          %s489 = scalar_select %p488, %s487, 3
          %s490 = smul.u32 128, %s489
          %p491 = scmp.ne.s32.totalorder 0, %s490
          %s492 = smul.addr %s20, 8
          %s493 = sadd.s32 %s486, %s492
          %s494 = smul.addr %s493, 8
          %s495 = scalar_lea.vmem %s5, %s494
          // Predicated region
          $region45: #{tpu_custom_call.1} parent=43 // pred_check
            %p496 = pneg %p491
          $region46: #{tpu_custom_call.1} parent=43 // pred_check_branch
            %498 = sbr.rel (%p496) target = $region48
          $region47: #{tpu_custom_call.1} parent=43 // pred_region
            // Predicated region
            $region49: #{tpu_custom_call.1} parent=47 // pred_check
              _
            $region50: #{tpu_custom_call.1} parent=47 // pred_check_branch
              %500 = sbr.rel (0) target = $region52
            $region51: #{tpu_custom_call.1} parent=47 // pred_region
              // Predicated region
              $region71: #{tpu_custom_call.1} parent=51 // pred_check
                _
              $region72: #{tpu_custom_call.1} parent=51 // pred_check_branch
                %555 = sbr.rel (0) target = $region74
              $region73: #{tpu_custom_call.1} parent=51 // pred_region
                %s556 = sdiv.u32.pop %s489, 3
                %s557 = srem.u32.pop %s489, 3
                // While loop
                $region75: #{tpu_custom_call.1} parent=73 // loop_pre_header
                  _
                $region76: #{tpu_custom_call.1} parent=73 // loop_header
                  %s559 = sphi 0, %s561
                  %p560 = scmp.ge.s32.totalorder %s559, %s556
                  %s564 = sphi 0, %s575
                  %s565 = sphi %s482, %s578
                  %s566 = sphi %s495, %s579
                $region77: #{tpu_custom_call.1} parent=73 // loop_header_branch
                  %563 = sbr.rel (%p560) target = $region81
                $region78: #{tpu_custom_call.1} parent=73 // loop_body
                  %v567 = vld [vmem:[%s565] sm:$0xff]
                  %568 = vst [vmem:[%s566] sm:$0xff] %v567
                  %v569 = vld [vmem:[%s565 + $0x8] sm:$0xff]
                  %570 = vst [vmem:[%s566 + $0x8] sm:$0xff] %v569
                  %v571 = vld [vmem:[%s565 + $0x10] sm:$0xff]
                  %572 = vst [vmem:[%s566 + $0x10] sm:$0xff] %v571
                  %s573 = sadd.s32 1, %s564
                  %p574 = scmp.ge.s32.totalorder %s573, %s556
                  %s575 = scalar_select %p574, 0, %s573
                  %s576 = smul.u32 %s575, 24
                  %s577 = smul.u32 %s575, 24
                  %s578 = scalar_lea.vmem %s482, %s576 [#allocation2]
                  %s579 = scalar_lea.vmem %s495, %s577
                $region79: #{tpu_custom_call.1} parent=73 // loop_footer
                  %s561 = sadd.s32 %s559, 1
                $region80: #{tpu_custom_call.1} parent=73 // loop_footer_branch
                  %558 = sbr.rel target = $region76
                $region81: #{tpu_custom_call.1} parent=73 // loop_exit
                  _
                %s580 = sdiv.u32.pop %s489, 3
                %s581 = srem.u32.pop %s489, 3
                %s582 = smul.u32 %s580, 3
                %s583 = smul.u32 8, %s582
                %s584 = scalar_lea.vmem %s482, %s583 [#allocation2]
                %s585 = smul.u32 8, %s582
                %s586 = scalar_lea.vmem %s495, %s585
                // While loop
                $region82: #{tpu_custom_call.1} parent=73 // loop_pre_header
                  _
                $region83: #{tpu_custom_call.1} parent=73 // loop_header
                  %s588 = sphi 0, %s590
                  %p589 = scmp.ge.s32.totalorder %s588, %s581
                  %s593 = sphi 0, %s600
                  %s594 = sphi %s584, %s603
                  %s595 = sphi %s586, %s604
                $region84: #{tpu_custom_call.1} parent=73 // loop_header_branch
                  %592 = sbr.rel (%p589) target = $region88
                $region85: #{tpu_custom_call.1} parent=73 // loop_body
                  %v596 = vld [vmem:[%s594] sm:$0xff]
                  %597 = vst [vmem:[%s595] sm:$0xff] %v596
                  %s598 = sadd.s32 1, %s593
                  %p599 = scmp.ge.s32.totalorder %s598, %s581
                  %s600 = scalar_select %p599, 0, %s598
                  %s601 = smul.u32 %s600, 8
                  %s602 = smul.u32 %s600, 8
                  %s603 = scalar_lea.vmem %s584, %s601 [#allocation2]
                  %s604 = scalar_lea.vmem %s586, %s602
                $region86: #{tpu_custom_call.1} parent=73 // loop_footer
                  %s590 = sadd.s32 %s588, 1
                $region87: #{tpu_custom_call.1} parent=73 // loop_footer_branch
                  %587 = sbr.rel target = $region83
                $region88: #{tpu_custom_call.1} parent=73 // loop_exit
                  _
              $region74: #{tpu_custom_call.1} parent=51 // pred_fallthru
                _
              // Predicated region
              $region89: #{tpu_custom_call.1} parent=51 // pred_check
                _
              $region90: #{tpu_custom_call.1} parent=51 // pred_check_branch
                %606 = sbr.rel target = $region92
              $region91: #{tpu_custom_call.1} parent=51 // pred_region
                _
              $region92: #{tpu_custom_call.1} parent=51 // pred_fallthru
                _
            $region52: #{tpu_custom_call.1} parent=47 // pred_fallthru
              _
            // Predicated region
            $region53: #{tpu_custom_call.1} parent=47 // pred_check
              _
            $region54: #{tpu_custom_call.1} parent=47 // pred_check_branch
              %502 = sbr.rel target = $region56
            $region55: #{tpu_custom_call.1} parent=47 // pred_region
              %s504 = ssub.s32 256, 1
              %s505 = sdiv.u32.pop %s489, 3
              %s506 = srem.u32.pop %s489, 3
              // While loop
              $region57: #{tpu_custom_call.1} parent=55 // loop_pre_header
                _
              $region58: #{tpu_custom_call.1} parent=55 // loop_header
                %s508 = sphi 0, %s510
                %p509 = scmp.ge.s32.totalorder %s508, %s505
                %s513 = sphi 0, %s524
                %s514 = sphi %s482, %s527
                %s515 = sphi %s495, %s528
              $region59: #{tpu_custom_call.1} parent=55 // loop_header_branch
                %512 = sbr.rel (%p509) target = $region63
              $region60: #{tpu_custom_call.1} parent=55 // loop_body
                %v516 = vld [vmem:[%s514] sm:%s504]
                %517 = vst [vmem:[%s515] sm:%s504] %v516
                %v518 = vld [vmem:[%s514 + $0x8] sm:%s504]
                %519 = vst [vmem:[%s515 + $0x8] sm:%s504] %v518
                %v520 = vld [vmem:[%s514 + $0x10] sm:%s504]
                %521 = vst [vmem:[%s515 + $0x10] sm:%s504] %v520
                %s522 = sadd.s32 1, %s513
                %p523 = scmp.ge.s32.totalorder %s522, %s505
                %s524 = scalar_select %p523, 0, %s522
                %s525 = smul.u32 %s524, 24
                %s526 = smul.u32 %s524, 24
                %s527 = scalar_lea.vmem %s482, %s525 [#allocation2]
                %s528 = scalar_lea.vmem %s495, %s526
              $region61: #{tpu_custom_call.1} parent=55 // loop_footer
                %s510 = sadd.s32 %s508, 1
              $region62: #{tpu_custom_call.1} parent=55 // loop_footer_branch
                %507 = sbr.rel target = $region58
              $region63: #{tpu_custom_call.1} parent=55 // loop_exit
                _
              %s529 = sdiv.u32.pop %s489, 3
              %s530 = srem.u32.pop %s489, 3
              %s531 = smul.u32 %s529, 3
              %s532 = smul.u32 8, %s531
              %s533 = scalar_lea.vmem %s482, %s532 [#allocation2]
              %s534 = smul.u32 8, %s531
              %s535 = scalar_lea.vmem %s495, %s534
              // While loop
              $region64: #{tpu_custom_call.1} parent=55 // loop_pre_header
                _
              $region65: #{tpu_custom_call.1} parent=55 // loop_header
                %s537 = sphi 0, %s539
                %p538 = scmp.ge.s32.totalorder %s537, %s530
                %s542 = sphi 0, %s549
                %s543 = sphi %s533, %s552
                %s544 = sphi %s535, %s553
              $region66: #{tpu_custom_call.1} parent=55 // loop_header_branch
                %541 = sbr.rel (%p538) target = $region70
              $region67: #{tpu_custom_call.1} parent=55 // loop_body
                %v545 = vld [vmem:[%s543] sm:%s504]
                %546 = vst [vmem:[%s544] sm:%s504] %v545
                %s547 = sadd.s32 1, %s542
                %p548 = scmp.ge.s32.totalorder %s547, %s530
                %s549 = scalar_select %p548, 0, %s547
                %s550 = smul.u32 %s549, 8
                %s551 = smul.u32 %s549, 8
                %s552 = scalar_lea.vmem %s533, %s550 [#allocation2]
                %s553 = scalar_lea.vmem %s535, %s551
              $region68: #{tpu_custom_call.1} parent=55 // loop_footer
                %s539 = sadd.s32 %s537, 1
              $region69: #{tpu_custom_call.1} parent=55 // loop_footer_branch
                %536 = sbr.rel target = $region65
              $region70: #{tpu_custom_call.1} parent=55 // loop_exit
                _
            $region56: #{tpu_custom_call.1} parent=47 // pred_fallthru
              _
          $region48: #{tpu_custom_call.1} parent=43 // pred_fallthru
            _
          %607 = vnop
        $region44: #{tpu_custom_call.1} parent=39 // pred_fallthru
          _
      $region40: #{tpu_custom_call.1} parent=5 // pred_fallthru
        _
      %p608 = scmp.le.s32.totalorder 2, %s11
      // Predicated region
      $region93: #{tpu_custom_call.1} parent=5 // pred_check
        %p609 = pneg %p608
      $region94: #{tpu_custom_call.1} parent=5 // pred_check_branch
        %611 = sbr.rel (%p609) target = $region96
      $region95: #{tpu_custom_call.1} parent=5 // pred_region
        %s612 = ssub.s32 %s11, 2
        // Predicated region
        $region97: #{tpu_custom_call.1} parent=95 // pred_check
          %p613 = pneg %p176
        $region98: #{tpu_custom_call.1} parent=95 // pred_check_branch
          %615 = sbr.rel (%p613) target = $region100
        $region99: #{tpu_custom_call.1} parent=95 // pred_region
          %s616 = sand.u32 %s161, 1
          %s617 = sand.u32 %s161, 1
          %s618 = smul.addr %s617, 24
          %s619 = scalar_lea.vmem [#allocation2], %s618
        $region100: #{tpu_custom_call.1} parent=95 // pred_fallthru
          _
      $region96: #{tpu_custom_call.1} parent=5 // pred_fallthru
        _
    $region6: #{tpu_custom_call.1} parent=1 // loop_footer
      %s15 = sadd.s32 1, %s11
    $region7: #{tpu_custom_call.1} parent=1 // loop_footer_branch
      %10 = sbr.rel target = $region3
    $region8: #{tpu_custom_call.1} parent=1 // loop_exit
      _

</llo_original>
